<compile_context>
chip_gen: v7x
topology: tpu7x:2x2x1
jax: 0.10.0
libtpu: 0.0.40
codegen_flags: <defaults>
</compile_context>

<pallas_src>
import functools
import math

import jax
import jax.numpy as jnp
from jax.experimental import pallas as pl
from jax.experimental.pallas import tpu as pltpu


def _cross_attn_cls_kernel(x_ref, wqkv_ref, bqkv_ref, g_ref, gt_ref,
                           wo_ref, bo_ref, out_ref, attn_scratch,
                           *, batch, n_text, d_model):
    """Whole-batch multi-head cross-attention of one CLS image token (query)
    per batch element against that element's T text tokens (key/value).

    x_ref layout: [B*(T+1), D]; row b*(T+1) is batch b's CLS patch token,
    rows b*(T+1)+1 .. b*(T+1)+T are batch b's text tokens.
    """
    seq = n_text + 1

    # Single fused QKV projection for every row of every batch element
    # (one MXU stream instead of B separate Q and K/V streams).
    qkv = (jnp.dot(x_ref[...], wqkv_ref[...], preferred_element_type=jnp.float32)
           + bqkv_ref[...])                                            # [B*(T+1), 3D]

    g_scaled = g_ref[...]   # [D, H] one-hot head grouping, pre-scaled by 1/sqrt(head_dim)
    gt = gt_ref[...]        # [H, D] one-hot head -> dim broadcast

    for b in range(batch):  # static unroll; batch is tiny (B=2)
        base = b * seq
        q = qkv[base:base + 1, 0:d_model]                              # [1, D]
        k = qkv[base + 1:base + seq, d_model:2 * d_model]              # [T, D]
        v = qkv[base + 1:base + seq, 2 * d_model:3 * d_model]          # [T, D]

        # Per-head scores: s[t, h] = (1/sqrt(hd)) * sum_{d in head h} q[0,d]*k[t,d]
        s = jnp.dot(q * k, g_scaled, preferred_element_type=jnp.float32)  # [T, H]

        # Softmax over the T text tokens (axis 0), independently per head (lane).
        m = jnp.max(s, axis=0, keepdims=True)                          # [1, H]
        p = jnp.exp(s - m)                                             # [T, H]
        p = p / jnp.sum(p, axis=0, keepdims=True)                      # [T, H]

        # attn[0, d] = sum_t p[t, head(d)] * v[t, d]
        p_full = jnp.dot(p, gt, preferred_element_type=jnp.float32)    # [T, D]
        attn_scratch[b:b + 1, :] = jnp.sum(p_full * v, axis=0, keepdims=True)

    # Output projection for the whole batch in a single matmul.
    out = (jnp.dot(attn_scratch[...], wo_ref[...], preferred_element_type=jnp.float32)
           + bo_ref[...])                                              # [B, D]
    out_ref[...] = out.astype(out_ref.dtype)


def prepare_cross_attention_params(params, *, embed_dim, num_heads):
    """One-time host prep: fuse/transpose the weights and build the one-hot
    head-grouping matrices so none of this glue runs per forward call."""
    d = embed_dim
    if d % num_heads != 0:
        raise ValueError(f"embed_dim={d} must be divisible by num_heads={num_heads}")
    head_dim = d // num_heads
    scale = 1.0 / math.sqrt(head_dim)

    d_idx = jnp.arange(d, dtype=jnp.int32)
    h_idx = jnp.arange(num_heads, dtype=jnp.int32)
    g = (d_idx[:, None] // head_dim == h_idx[None, :]).astype(jnp.float32)  # [D, H]

    return {
        "w_qkv": jnp.asarray(params["in_proj_weight"]).T,                   # [D, 3D]
        "b_qkv": jnp.asarray(params["in_proj_bias"]).reshape(1, 3 * d),     # [1, 3D]
        "wo_t": jnp.asarray(params["out_proj_weight"]).T,                   # [D, D]
        "bo": jnp.asarray(params["out_proj_bias"]).reshape(1, d),           # [1, D]
        "g_scaled": g * scale,                                              # [D, H]
        "gt": g.T,                                                          # [H, D]
    }


def cross_attention_image_based(patch_feats, text_feats, prepared):
    """
    patch_feats: [B, N, D] image patch tokens (query; batch_first=True semantics)
    text_feats:  [B, T, D] text tokens (key/value)
    Returns: [B, D]  == nn.MultiheadAttention(patch, text, text)[0][:, 0, :]
    """
    B, _, D = patch_feats.shape
    _, T, _ = text_feats.shape

    # Only query token 0 contributes to the module's output: pack [CLS | text]
    # per batch element into one flat [B*(T+1), D] matrix so the whole batch
    # is a single kernel invocation and Q/K/V share one projection matmul.
    x = jnp.concatenate([patch_feats[:, 0:1, :], text_feats], axis=1)       # [B, T+1, D]
    x_flat = x.reshape(B * (T + 1), D)

    kernel = functools.partial(_cross_attn_cls_kernel, batch=B, n_text=T, d_model=D)
    vmem = pl.BlockSpec(memory_space=pltpu.MemorySpace.VMEM)

    # TODO(synk): at realistic D (>=512) cast MXU operands to bf16 (f32 accum),
    # tile projection columns, and set vmem_limit_bytes for v7x's 64 MiB VMEM.
    return pl.pallas_call(
        kernel,
        out_shape=jax.ShapeDtypeStruct((B, D), patch_feats.dtype),          # 2-D output
        in_specs=[vmem] * 7,
        out_specs=vmem,
        scratch_shapes=[pltpu.VMEM((B, D), jnp.float32)],
    )(x_flat, prepared["w_qkv"], prepared["b_qkv"],
      prepared["g_scaled"], prepared["gt"], prepared["wo_t"], prepared["bo"])


def _reference(patch_feats, text_feats, params, *, num_heads):
    """Plain-JAX reference mirroring nn.MultiheadAttention(patch, text, text)[:, 0, :]."""
    B, N, D = patch_feats.shape
    _, T, _ = text_feats.shape
    hd = D // num_heads
    w = params["in_proj_weight"]
    b = params["in_proj_bias"]
    q = patch_feats @ w[:D].T + b[:D]
    k = text_feats @ w[D:2 * D].T + b[D:2 * D]
    v = text_feats @ w[2 * D:].T + b[2 * D:]
    q = q.reshape(B, N, num_heads, hd).transpose(0, 2, 1, 3)
    k = k.reshape(B, T, num_heads, hd).transpose(0, 2, 1, 3)
    v = v.reshape(B, T, num_heads, hd).transpose(0, 2, 1, 3)
    s = jnp.einsum("bhnd,bhtd->bhnt", q, k) / math.sqrt(hd)
    p = jax.nn.softmax(s, axis=-1)
    o = jnp.einsum("bhnt,bhtd->bhnd", p, v).transpose(0, 2, 1, 3).reshape(B, N, D)
    o = o @ params["out_proj_weight"].T + params["out_proj_bias"]
    return o[:, 0, :]


if __name__ == "__main__":
    B, N, T, D = 2, 16, 8, 32   # batch, image patches, text tokens, embed_dim
    num_heads = 8

    key = jax.random.PRNGKey(0)
    k_patch, k_text, k_w1, k_b1, k_w2, k_b2 = jax.random.split(key, 6)

    patch_feats = jax.random.normal(k_patch, (B, N, D), dtype=jnp.float32)
    text_feats = jax.random.normal(k_text, (B, T, D), dtype=jnp.float32)

    # Deterministic parameter init (shapes follow nn.MultiheadAttention(embed_dim=D)).
    bound = 1.0 / math.sqrt(D)
    params = {
        "in_proj_weight": jax.random.uniform(k_w1, (3 * D, D), minval=-bound, maxval=bound),
        "in_proj_bias": jax.random.uniform(k_b1, (3 * D,), minval=-bound, maxval=bound),
        "out_proj_weight": jax.random.uniform(k_w2, (D, D), minval=-bound, maxval=bound),
        "out_proj_bias": jax.random.uniform(k_b2, (D,), minval=-bound, maxval=bound),
    }

    # Weight fusion / transposes / grouping matrices built once, not per call.
    prepared = prepare_cross_attention_params(params, embed_dim=D, num_heads=num_heads)

    fwd = jax.jit(cross_attention_image_based)
    out = jax.block_until_ready(fwd(patch_feats, text_feats, prepared))
    assert out.shape == (B, D), out.shape

    ref = _reference(patch_feats, text_feats, params, num_heads=num_heads)
    max_err = float(jnp.max(jnp.abs(out - ref)))
    assert jnp.allclose(out, ref, atol=1e-4, rtol=1e-4), max_err

    print("KERNEL_OK")
</pallas_src>

<mosaic_0001>
module attributes {stable_mosaic.version = 11 : i64} {
  func.func @_cross_attn_cls_kernel(%arg0: memref<18x32xf32, #tpu.memory_space<vmem>>, %arg1: memref<32x96xf32, #tpu.memory_space<vmem>>, %arg2: memref<1x96xf32, #tpu.memory_space<vmem>>, %arg3: memref<32x8xf32, #tpu.memory_space<vmem>>, %arg4: memref<8x32xf32, #tpu.memory_space<vmem>>, %arg5: memref<32x32xf32, #tpu.memory_space<vmem>>, %arg6: memref<1x32xf32, #tpu.memory_space<vmem>>, %arg7: memref<2x32xf32, #tpu.memory_space<vmem>>, %arg8: memref<2x32xf32, #tpu.memory_space<vmem>>) attributes {dimension_semantics = [], scalar_prefetch = 0 : i64, scratch_operands = 1 : i64, tpu.core_type = #tpu.core_type<tc>} {
    %c0 = arith.constant 0 : index
    %c0_0 = arith.constant 0 : index
    %0 = vector.load %arg0[%c0, %c0_0] : memref<18x32xf32, #tpu.memory_space<vmem>>, vector<18x32xf32>
    %c0_1 = arith.constant 0 : index
    %c0_2 = arith.constant 0 : index
    %1 = vector.load %arg1[%c0_1, %c0_2] : memref<32x96xf32, #tpu.memory_space<vmem>>, vector<32x96xf32>
    %cst = arith.constant dense<0.000000e+00> : vector<18x96xf32>
    %2 = tpu.matmul %0, %1, %cst {dimension_numbers = #tpu.dot_dimension_numbers<[1], [0], [0], [1], [0, 0, 1, 1], [], []>} : vector<18x32xf32>, vector<32x96xf32>, vector<18x96xf32> -> vector<18x96xf32>
    %c0_3 = arith.constant 0 : index
    %c0_4 = arith.constant 0 : index
    %3 = vector.load %arg2[%c0_3, %c0_4] : memref<1x96xf32, #tpu.memory_space<vmem>>, vector<1x96xf32>
    %4 = vector.broadcast %3 : vector<1x96xf32> to vector<18x96xf32>
    %5 = arith.addf %2, %4 : vector<18x96xf32>
    %c0_5 = arith.constant 0 : index
    %c0_6 = arith.constant 0 : index
    %6 = vector.load %arg3[%c0_5, %c0_6] : memref<32x8xf32, #tpu.memory_space<vmem>>, vector<32x8xf32>
    %c0_7 = arith.constant 0 : index
    %c0_8 = arith.constant 0 : index
    %7 = vector.load %arg4[%c0_7, %c0_8] : memref<8x32xf32, #tpu.memory_space<vmem>>, vector<8x32xf32>
    %8 = vector.extract_strided_slice %5 {offsets = [0, 0], sizes = [1, 32], strides = [1, 1]} : vector<18x96xf32> to vector<1x32xf32>
    %9 = vector.extract_strided_slice %5 {offsets = [1, 32], sizes = [8, 32], strides = [1, 1]} : vector<18x96xf32> to vector<8x32xf32>
    %10 = vector.extract_strided_slice %5 {offsets = [1, 64], sizes = [8, 32], strides = [1, 1]} : vector<18x96xf32> to vector<8x32xf32>
    %11 = vector.broadcast %8 : vector<1x32xf32> to vector<8x32xf32>
    %12 = arith.mulf %11, %9 : vector<8x32xf32>
    %cst_9 = arith.constant dense<0.000000e+00> : vector<8x8xf32>
    %13 = tpu.matmul %12, %6, %cst_9 {dimension_numbers = #tpu.dot_dimension_numbers<[1], [0], [0], [1], [0, 0, 1, 1], [], []>} : vector<8x32xf32>, vector<32x8xf32>, vector<8x8xf32> -> vector<8x8xf32>
    %cst_10 = arith.constant dense<0xFF800000> : vector<8xf32>
    %14 = vector.multi_reduction <maximumf>, %13, %cst_10 [0] : vector<8x8xf32> to vector<8xf32>
    %15 = vector.shape_cast %14 : vector<8xf32> to vector<1x8xf32>
    %16 = vector.broadcast %15 : vector<1x8xf32> to vector<8x8xf32>
    %17 = arith.subf %13, %16 : vector<8x8xf32>
    %18 = math.exp %17 : vector<8x8xf32>
    %cst_11 = arith.constant dense<0.000000e+00> : vector<8xf32>
    %19 = vector.multi_reduction <add>, %18, %cst_11 [0] : vector<8x8xf32> to vector<8xf32>
    %20 = vector.shape_cast %19 : vector<8xf32> to vector<1x8xf32>
    %21 = vector.broadcast %20 : vector<1x8xf32> to vector<8x8xf32>
    %22 = arith.divf %18, %21 : vector<8x8xf32>
    %cst_12 = arith.constant dense<0.000000e+00> : vector<8x32xf32>
    %23 = tpu.matmul %22, %7, %cst_12 {dimension_numbers = #tpu.dot_dimension_numbers<[1], [0], [0], [1], [0, 0, 1, 1], [], []>} : vector<8x8xf32>, vector<8x32xf32>, vector<8x32xf32> -> vector<8x32xf32>
    %24 = arith.mulf %23, %10 : vector<8x32xf32>
    %cst_13 = arith.constant dense<0.000000e+00> : vector<32xf32>
    %25 = vector.multi_reduction <add>, %24, %cst_13 [0] : vector<8x32xf32> to vector<32xf32>
    %26 = vector.shape_cast %25 : vector<32xf32> to vector<1x32xf32>
    %c0_14 = arith.constant 0 : index
    %c0_15 = arith.constant 0 : index
    %27 = vector.load %arg8[%c0_14, %c0_15] : memref<2x32xf32, #tpu.memory_space<vmem>>, vector<1x32xf32>
    tpu.vector_store %arg8[%c0_14, %c0_15], %26 {strides = array<i32>} : memref<2x32xf32, #tpu.memory_space<vmem>>, vector<1x32xf32>,
    %28 = vector.extract_strided_slice %5 {offsets = [9, 0], sizes = [1, 32], strides = [1, 1]} : vector<18x96xf32> to vector<1x32xf32>
    %29 = vector.extract_strided_slice %5 {offsets = [10, 32], sizes = [8, 32], strides = [1, 1]} : vector<18x96xf32> to vector<8x32xf32>
    %30 = vector.extract_strided_slice %5 {offsets = [10, 64], sizes = [8, 32], strides = [1, 1]} : vector<18x96xf32> to vector<8x32xf32>
    %31 = vector.broadcast %28 : vector<1x32xf32> to vector<8x32xf32>
    %32 = arith.mulf %31, %29 : vector<8x32xf32>
    %cst_16 = arith.constant dense<0.000000e+00> : vector<8x8xf32>
    %33 = tpu.matmul %32, %6, %cst_16 {dimension_numbers = #tpu.dot_dimension_numbers<[1], [0], [0], [1], [0, 0, 1, 1], [], []>} : vector<8x32xf32>, vector<32x8xf32>, vector<8x8xf32> -> vector<8x8xf32>
    %cst_17 = arith.constant dense<0xFF800000> : vector<8xf32>
    %34 = vector.multi_reduction <maximumf>, %33, %cst_17 [0] : vector<8x8xf32> to vector<8xf32>
    %35 = vector.shape_cast %34 : vector<8xf32> to vector<1x8xf32>
    %36 = vector.broadcast %35 : vector<1x8xf32> to vector<8x8xf32>
    %37 = arith.subf %33, %36 : vector<8x8xf32>
    %38 = math.exp %37 : vector<8x8xf32>
    %cst_18 = arith.constant dense<0.000000e+00> : vector<8xf32>
    %39 = vector.multi_reduction <add>, %38, %cst_18 [0] : vector<8x8xf32> to vector<8xf32>
    %40 = vector.shape_cast %39 : vector<8xf32> to vector<1x8xf32>
    %41 = vector.broadcast %40 : vector<1x8xf32> to vector<8x8xf32>
    %42 = arith.divf %38, %41 : vector<8x8xf32>
    %cst_19 = arith.constant dense<0.000000e+00> : vector<8x32xf32>
    %43 = tpu.matmul %42, %7, %cst_19 {dimension_numbers = #tpu.dot_dimension_numbers<[1], [0], [0], [1], [0, 0, 1, 1], [], []>} : vector<8x8xf32>, vector<8x32xf32>, vector<8x32xf32> -> vector<8x32xf32>
    %44 = arith.mulf %43, %30 : vector<8x32xf32>
    %cst_20 = arith.constant dense<0.000000e+00> : vector<32xf32>
    %45 = vector.multi_reduction <add>, %44, %cst_20 [0] : vector<8x32xf32> to vector<32xf32>
    %46 = vector.shape_cast %45 : vector<32xf32> to vector<1x32xf32>
    %c1 = arith.constant 1 : index
    %c0_21 = arith.constant 0 : index
    %47 = vector.load %arg8[%c1, %c0_21] : memref<2x32xf32, #tpu.memory_space<vmem>>, vector<1x32xf32>
    tpu.vector_store %arg8[%c1, %c0_21], %46 {strides = array<i32>} : memref<2x32xf32, #tpu.memory_space<vmem>>, vector<1x32xf32>,
    %c0_22 = arith.constant 0 : index
    %c0_23 = arith.constant 0 : index
    %48 = vector.load %arg8[%c0_22, %c0_23] : memref<2x32xf32, #tpu.memory_space<vmem>>, vector<2x32xf32>
    %c0_24 = arith.constant 0 : index
    %c0_25 = arith.constant 0 : index
    %49 = vector.load %arg5[%c0_24, %c0_25] : memref<32x32xf32, #tpu.memory_space<vmem>>, vector<32x32xf32>
    %cst_26 = arith.constant dense<0.000000e+00> : vector<2x32xf32>
    %50 = tpu.matmul %48, %49, %cst_26 {dimension_numbers = #tpu.dot_dimension_numbers<[1], [0], [0], [1], [0, 0, 1, 1], [], []>} : vector<2x32xf32>, vector<32x32xf32>, vector<2x32xf32> -> vector<2x32xf32>
    %c0_27 = arith.constant 0 : index
    %c0_28 = arith.constant 0 : index
    %51 = vector.load %arg6[%c0_27, %c0_28] : memref<1x32xf32, #tpu.memory_space<vmem>>, vector<1x32xf32>
    %52 = vector.broadcast %51 : vector<1x32xf32> to vector<2x32xf32>
    %53 = arith.addf %50, %52 : vector<2x32xf32>
    %c0_29 = arith.constant 0 : index
    %c0_30 = arith.constant 0 : index
    %54 = vector.load %arg7[%c0_29, %c0_30] : memref<2x32xf32, #tpu.memory_space<vmem>>, vector<2x32xf32>
    tpu.vector_store %arg7[%c0_29, %c0_30], %53 {strides = array<i32>} : memref<2x32xf32, #tpu.memory_space<vmem>>, vector<2x32xf32>,
    return
  }
}

</mosaic_0001>

<llo_original>
// kernel: cross_attention_image_based.1
$region0: #{cross_attention_image_based.1}
  #allocation0 [shape = 'u32[]', space=smem, size = 0x4, offset = 0x4, fixed_abs, tag = 'smem constant byte address 0x4 - core index']
  #allocation1 [shape = 'u32[144,128]{1,0:T(1,128)}', space=vmem, size = 0x12000, scoped, tag = 'internal scratch']
  #allocation2 [shape = 'f32[2,32]{1,0:T(2,128)}', space=vmem, size = 0x400, scoped, tag = 'scratch operand']
  %s0 = inlined_call_operand.vmem [shape: f32[18,32], index: 0, kind: input, shape index: {}]
  %s1 = inlined_call_operand.vmem [shape: f32[32,96], index: 1, kind: input, shape index: {}]
  %s2 = inlined_call_operand.vmem [shape: f32[1,96], index: 2, kind: input, shape index: {}]
  %s3 = inlined_call_operand.vmem [shape: f32[32,8], index: 3, kind: input, shape index: {}]
  %s4 = inlined_call_operand.vmem [shape: f32[8,32], index: 4, kind: input, shape index: {}]
  %s5 = inlined_call_operand.vmem [shape: f32[32,32], index: 5, kind: input, shape index: {}]
  %s6 = inlined_call_operand.vmem [shape: f32[1,32], index: 6, kind: input, shape index: {}]
  %s7 = inlined_call_operand.hbm [shape: f32[2,32], index: 7, kind: output, shape index: {}]
  %s8 = sld [smem:[#allocation0]]
  $region38: #{cross_attention_image_based.1} parent=0
    _
  %s10 = ssub.s32 1, %s8
  %s11 = scalar_select 0, %s10, %s8
  $region1: #{cross_attention_image_based.1} parent=0
    #allocation3 [shape = 'u8[1024]{0}', space=vmem, size = 0x400, scoped, tag = 'output window, operand 0, single buffered']
    #allocation4 [shape = 's32[1]{0}', space=sflag, size = 0x4, scoped, tag = 'scoped memory for cross_attention_image_based.1']
    %12 = vsyncpa [#allocation4], 0
    // Predicated region
    $region2: #{cross_attention_image_based.1} parent=1 // pred_check
      _
    $region3: #{cross_attention_image_based.1} parent=1 // pred_check_branch
      %14 = sbr.rel (0) target = $region5
    $region4: #{cross_attention_image_based.1} parent=1 // pred_region
      _
    $region5: #{cross_attention_image_based.1} parent=1 // pred_fallthru
      _
    // Predicated region
    $region6: #{cross_attention_image_based.1} parent=1 // pred_check
      _
    $region7: #{cross_attention_image_based.1} parent=1 // pred_check_branch
      %16 = sbr.rel (0) target = $region9
    $region8: #{cross_attention_image_based.1} parent=1 // pred_region
      _
    $region9: #{cross_attention_image_based.1} parent=1 // pred_fallthru
      _
    // Predicated region
    $region10: #{cross_attention_image_based.1} parent=1 // pred_check
      _
    $region11: #{cross_attention_image_based.1} parent=1 // pred_check_branch
      %18 = sbr.rel (0) target = $region13
    $region12: #{cross_attention_image_based.1} parent=1 // pred_region
      _
    $region13: #{cross_attention_image_based.1} parent=1 // pred_fallthru
      _
    // Predicated region
    $region14: #{cross_attention_image_based.1} parent=1 // pred_check
      _
    $region15: #{cross_attention_image_based.1} parent=1 // pred_check_branch
      %20 = sbr.rel (0) target = $region17
    $region16: #{cross_attention_image_based.1} parent=1 // pred_region
      _
    $region17: #{cross_attention_image_based.1} parent=1 // pred_fallthru
      _
    // Predicated region
    $region18: #{cross_attention_image_based.1} parent=1 // pred_check
      _
    $region19: #{cross_attention_image_based.1} parent=1 // pred_check_branch
      %22 = sbr.rel (0) target = $region21
    $region20: #{cross_attention_image_based.1} parent=1 // pred_region
      _
    $region21: #{cross_attention_image_based.1} parent=1 // pred_fallthru
      _
    // Predicated region
    $region22: #{cross_attention_image_based.1} parent=1 // pred_check
      _
    $region23: #{cross_attention_image_based.1} parent=1 // pred_check_branch
      %24 = sbr.rel (0) target = $region25
    $region24: #{cross_attention_image_based.1} parent=1 // pred_region
      _
    $region25: #{cross_attention_image_based.1} parent=1 // pred_fallthru
      _
    // Predicated region
    $region26: #{cross_attention_image_based.1} parent=1 // pred_check
      _
    $region27: #{cross_attention_image_based.1} parent=1 // pred_check_branch
      %26 = sbr.rel (0) target = $region29
    $region28: #{cross_attention_image_based.1} parent=1 // pred_region
      _
    $region29: #{cross_attention_image_based.1} parent=1 // pred_fallthru
      _
    %v27 = vld [vmem:[%s0] sm:$0xff]
    %v28 = vld [vmem:[%s0 + $0x8] sm:$0xff]
    %v29 = vld [vmem:[%s0 + $0x10] sm:$0x3]
    %v30 = vld [vmem:[%s1] sm:$0xff]
    %v31 = vld [vmem:[%s1 + $0x8] sm:$0xff]
    %v32 = vld [vmem:[%s1 + $0x10] sm:$0xff]
    %v33 = vld [vmem:[%s1 + $0x18] sm:$0xff]
    %v34 = vld [vmem:[%s2] sm:$0x1]
    %v36 = vlaneseq
    %v37 = vshrl.u32 %v36, 7
    %v38 = vsub.s32 0, %v37
    %v39 = vrot.slane %v34, %v38
    %vm41 = vcmask 261120
    %v43 = vsel %vm41, %v27, 0
    %v46 = vsel %vm41, %v28, 0
    %v49 = vsel %vm41, %v29, 0
    %51 = vmatprep.subr.mxu0 0.0
    %52 = vmatpush1.msra.mxu0 %v30
    %53 = vmatprep.subr.mxu0 0.0
    %54 = vmatpush1.msra.mxu0 %v31
    %55 = vmatprep.subr.mxu0 0.0
    %56 = vmatpush1.msra.mxu0 %v32
    %57 = vmatprep.subr.mxu0 0.0
    %58 = vmatpush1.msra.mxu0 %v33
    %59 = vmatprep.subr.mxu0 0.0
    %60 = vmatpush1.msra.mxu0 0.0
    %61 = vmatprep.subr.mxu0 0.0
    %62 = vmatpush1.msra.mxu0 0.0
    %63 = vmatprep.subr.mxu0 0.0
    %64 = vmatpush1.msra.mxu0 0.0
    %65 = vmatprep.subr.mxu0 0.0
    %66 = vmatpush1.msra.mxu0 0.0
    %67 = vmatprep.subr.mxu0 0.0
    %68 = vmatpush1.msra.mxu0 0.0
    %69 = vmatprep.subr.mxu0 0.0
    %70 = vmatpush1.msra.mxu0 0.0
    %71 = vmatprep.subr.mxu0 0.0
    %72 = vmatpush1.msra.mxu0 0.0
    %73 = vmatprep.subr.mxu0 0.0
    %74 = vmatpush1.msra.mxu0 0.0
    %75 = vmatprep.subr.mxu0 0.0
    %76 = vmatpush1.msra.mxu0 0.0
    %77 = vmatprep.subr.mxu0 0.0
    %78 = vmatpush1.msra.mxu0 0.0
    %79 = vmatprep.subr.mxu0 0.0
    %80 = vmatpush1.msra.mxu0 0.0
    %81 = vmatprep.subr.mxu0 0.0
    %82 = vmatpush1.msra.mxu0 0.0
    %83 = vmatprep.subr.mxu0 0.0
    %84 = vmatpush1.msra.mxu0 0.0
    %85 = vmatprep.subr.mxu0 0.0
    %86 = vmatpush1.msra.mxu0 0.0
    %87 = vmatprep.subr.mxu0 0.0
    %88 = vmatpush1.msra.mxu0 0.0
    %89 = vmatprep.subr.mxu0 0.0
    %90 = vmatpush1.msra.mxu0 0.0
    %91 = vmatprep.subr.mxu0 0.0
    %92 = vmatpush1.msra.mxu0 0.0
    %93 = vmatprep.subr.mxu0 0.0
    %94 = vmatpush1.msra.mxu0 0.0
    %95 = vmatprep.subr.mxu0 0.0
    %96 = vmatpush1.msra.mxu0 0.0
    %97 = vmatprep.subr.mxu0 0.0
    %98 = vmatpush1.msra.mxu0 0.0
    %99 = vmatprep.subr.mxu0 0.0
    %100 = vmatpush1.msra.mxu0 0.0
    %101 = vmatprep.subr.mxu0 0.0
    %102 = vmatpush1.msra.mxu0 0.0
    %103 = vmatprep.subr.mxu0 0.0
    %104 = vmatpush1.msra.mxu0 0.0
    %105 = vmatprep.subr.mxu0 0.0
    %106 = vmatpush1.msra.mxu0 0.0
    %107 = vmatprep.subr.mxu0 0.0
    %108 = vmatpush1.msra.mxu0 0.0
    %109 = vmatprep.subr.mxu0 0.0
    %110 = vmatpush1.msra.mxu0 0.0
    %111 = vmatprep.subr.mxu0 0.0
    %112 = vmatpush1.msra.mxu0 0.0
    %113 = vmatprep.subr.mxu0 0.0
    %114 = vmatpush1.msra.mxu0 0.0
    %115 = vmatprep.mubr.f32.mxu0 0.0
    %116 = vmatmul.mubr.f32.gmra.mrb[0].mxu0 %v43
    %v117 = vpop.f32.mrb[0].mxu0
    %v118 = vadd.f32 %v39, %v117
    %v119 = vpop.f32.mrb[0].mxu0
    %120 = vmatprep.mubr.f32.mxu0 0.0
    %121 = vmatmul.mubr.f32.gmra.mrb[0].mxu0 %v46
    %v122 = vpop.f32.mrb[0].mxu0
    %v123 = vadd.f32 %v39, %v122
    %v124 = vpop.f32.mrb[0].mxu0
    %125 = vmatprep.mubr.f32.mxu0 0.0
    %126 = vmatmul.mubr.f32.gmra.mrb[0].mxu0 %v49
    %v127 = vpop.f32.mrb[0].mxu0
    %v128 = vadd.f32 %v39, %v127
    %v129 = vpop.f32.mrb[0].mxu0
    %130 = vdwg.mxu0
    %v131 = vld [vmem:[%s3] sm:$0xff]
    %v132 = vld [vmem:[%s3 + $0x8] sm:$0xff]
    %v133 = vld [vmem:[%s3 + $0x10] sm:$0xff]
    %v134 = vld [vmem:[%s3 + $0x18] sm:$0xff]
    %v135 = vld [vmem:[%s4] sm:$0xff]
    %v136 = vlaneseq
    %v137 = vshrl.u32 %v136, 7
    %v138 = vsub.s32 0, %v137
    %v139 = vrot.slane %v118, %v138
    %vm142 = vcmask 1046528
    %v143 = vrot.slane %v118, 1
    %v144 = vrot.slane %v123, 1
    %v145 = vsel %vm142, %v143, %v144
    %146 = vrot.lane.b32.xlu0 %v145, 96
    %v147 = vpop.permute.xlu0 %146
    %v149 = vmul.f32 %v139, %v147
    %v151 = vsel %vm41, %v149, 0
    %153 = vmatprep.subr.mxu0 0.0
    %154 = vmatpush1.msra.mxu0 %v131
    %155 = vmatprep.subr.mxu0 0.0
    %156 = vmatpush1.msra.mxu0 %v132
    %157 = vmatprep.subr.mxu0 0.0
    %158 = vmatpush1.msra.mxu0 %v133
    %159 = vmatprep.subr.mxu0 0.0
    %160 = vmatpush1.msra.mxu0 %v134
    %161 = vmatprep.subr.mxu0 0.0
    %162 = vmatpush1.msra.mxu0 0.0
    %163 = vmatprep.subr.mxu0 0.0
    %164 = vmatpush1.msra.mxu0 0.0
    %165 = vmatprep.subr.mxu0 0.0
    %166 = vmatpush1.msra.mxu0 0.0
    %167 = vmatprep.subr.mxu0 0.0
    %168 = vmatpush1.msra.mxu0 0.0
    %169 = vmatprep.subr.mxu0 0.0
    %170 = vmatpush1.msra.mxu0 0.0
    %171 = vmatprep.subr.mxu0 0.0
    %172 = vmatpush1.msra.mxu0 0.0
    %173 = vmatprep.subr.mxu0 0.0
    %174 = vmatpush1.msra.mxu0 0.0
    %175 = vmatprep.subr.mxu0 0.0
    %176 = vmatpush1.msra.mxu0 0.0
    %177 = vmatprep.subr.mxu0 0.0
    %178 = vmatpush1.msra.mxu0 0.0
    %179 = vmatprep.subr.mxu0 0.0
    %180 = vmatpush1.msra.mxu0 0.0
    %181 = vmatprep.subr.mxu0 0.0
    %182 = vmatpush1.msra.mxu0 0.0
    %183 = vmatprep.subr.mxu0 0.0
    %184 = vmatpush1.msra.mxu0 0.0
    %185 = vmatprep.subr.mxu0 0.0
    %186 = vmatpush1.msra.mxu0 0.0
    %187 = vmatprep.subr.mxu0 0.0
    %188 = vmatpush1.msra.mxu0 0.0
    %189 = vmatprep.subr.mxu0 0.0
    %190 = vmatpush1.msra.mxu0 0.0
    %191 = vmatprep.subr.mxu0 0.0
    %192 = vmatpush1.msra.mxu0 0.0
    %193 = vmatprep.subr.mxu0 0.0
    %194 = vmatpush1.msra.mxu0 0.0
    %195 = vmatprep.subr.mxu0 0.0
    %196 = vmatpush1.msra.mxu0 0.0
    %197 = vmatprep.subr.mxu0 0.0
    %198 = vmatpush1.msra.mxu0 0.0
    %199 = vmatprep.subr.mxu0 0.0
    %200 = vmatpush1.msra.mxu0 0.0
    %201 = vmatprep.subr.mxu0 0.0
    %202 = vmatpush1.msra.mxu0 0.0
    %203 = vmatprep.subr.mxu0 0.0
    %204 = vmatpush1.msra.mxu0 0.0
    %205 = vmatprep.subr.mxu0 0.0
    %206 = vmatpush1.msra.mxu0 0.0
    %207 = vmatprep.subr.mxu0 0.0
    %208 = vmatpush1.msra.mxu0 0.0
    %209 = vmatprep.subr.mxu0 0.0
    %210 = vmatpush1.msra.mxu0 0.0
    %211 = vmatprep.subr.mxu0 0.0
    %212 = vmatpush1.msra.mxu0 0.0
    %213 = vmatprep.subr.mxu0 0.0
    %214 = vmatpush1.msra.mxu0 0.0
    %215 = vmatprep.subr.mxu0 0.0
    %216 = vmatpush1.msra.mxu0 0.0
    %217 = vmatprep.mubr.f32.mxu0 0.0
    %218 = vmatmul.mubr.f32.gmra.mrb[0].mxu0 %v151
    %v219 = vpop.f32.mrb[0].mxu0
    %v220 = vadd.f32 0.0, %v219
    %v221 = vpop.f32.mrb[0].mxu0
    %222 = vdwg.mxu0
    %vm223 = vcmask 64512
    %v224 = vsel %vm223, %v220, -inf
    %v225 = vrot.slane %v224, 4
    %v226 = vmax.f32 %v224, %v225
    %v227 = vrot.slane %v226, 2
    %v228 = vmax.f32 %v226, %v227
    %v229 = vrot.slane %v228, 1
    %v230 = vmax.f32 %v228, %v229
    %v231 = vsub.f32 %v220, %v230
    %v232 = vmul.f32 %v231, 1.442695
    %v233 = vpow.pop %v232
    %v234 = vsel %vm223, %v233, 0.0
    %v235 = vrot.slane %v234, 4
    %v236 = vadd.f32 %v234, %v235
    %v237 = vrot.slane %v236, 2
    %v238 = vadd.f32 %v236, %v237
    %v239 = vrot.slane %v238, 1
    %v240 = vadd.f32 %v238, %v239
    %v241 = vrcp.pop %v240
    %v242 = vmul.f32 %v233, %v241
    %v244 = vsel %vm223, %v242, 0
    %246 = vmatprep.subr.mxu0 0.0
    %247 = vmatpush1.msra.mxu0 %v135
    %248 = vmatprep.subr.mxu0 0.0
    %249 = vmatpush1.msra.mxu0 0.0
    %250 = vmatprep.subr.mxu0 0.0
    %251 = vmatpush1.msra.mxu0 0.0
    %252 = vmatprep.subr.mxu0 0.0
    %253 = vmatpush1.msra.mxu0 0.0
    %254 = vmatprep.subr.mxu0 0.0
    %255 = vmatpush1.msra.mxu0 0.0
    %256 = vmatprep.subr.mxu0 0.0
    %257 = vmatpush1.msra.mxu0 0.0
    %258 = vmatprep.subr.mxu0 0.0
    %259 = vmatpush1.msra.mxu0 0.0
    %260 = vmatprep.subr.mxu0 0.0
    %261 = vmatpush1.msra.mxu0 0.0
    %262 = vmatprep.subr.mxu0 0.0
    %263 = vmatpush1.msra.mxu0 0.0
    %264 = vmatprep.subr.mxu0 0.0
    %265 = vmatpush1.msra.mxu0 0.0
    %266 = vmatprep.subr.mxu0 0.0
    %267 = vmatpush1.msra.mxu0 0.0
    %268 = vmatprep.subr.mxu0 0.0
    %269 = vmatpush1.msra.mxu0 0.0
    %270 = vmatprep.subr.mxu0 0.0
    %271 = vmatpush1.msra.mxu0 0.0
    %272 = vmatprep.subr.mxu0 0.0
    %273 = vmatpush1.msra.mxu0 0.0
    %274 = vmatprep.subr.mxu0 0.0
    %275 = vmatpush1.msra.mxu0 0.0
    %276 = vmatprep.subr.mxu0 0.0
    %277 = vmatpush1.msra.mxu0 0.0
    %278 = vmatprep.subr.mxu0 0.0
    %279 = vmatpush1.msra.mxu0 0.0
    %280 = vmatprep.subr.mxu0 0.0
    %281 = vmatpush1.msra.mxu0 0.0
    %282 = vmatprep.subr.mxu0 0.0
    %283 = vmatpush1.msra.mxu0 0.0
    %284 = vmatprep.subr.mxu0 0.0
    %285 = vmatpush1.msra.mxu0 0.0
    %286 = vmatprep.subr.mxu0 0.0
    %287 = vmatpush1.msra.mxu0 0.0
    %288 = vmatprep.subr.mxu0 0.0
    %289 = vmatpush1.msra.mxu0 0.0
    %290 = vmatprep.subr.mxu0 0.0
    %291 = vmatpush1.msra.mxu0 0.0
    %292 = vmatprep.subr.mxu0 0.0
    %293 = vmatpush1.msra.mxu0 0.0
    %294 = vmatprep.subr.mxu0 0.0
    %295 = vmatpush1.msra.mxu0 0.0
    %296 = vmatprep.subr.mxu0 0.0
    %297 = vmatpush1.msra.mxu0 0.0
    %298 = vmatprep.subr.mxu0 0.0
    %299 = vmatpush1.msra.mxu0 0.0
    %300 = vmatprep.subr.mxu0 0.0
    %301 = vmatpush1.msra.mxu0 0.0
    %302 = vmatprep.subr.mxu0 0.0
    %303 = vmatpush1.msra.mxu0 0.0
    %304 = vmatprep.subr.mxu0 0.0
    %305 = vmatpush1.msra.mxu0 0.0
    %306 = vmatprep.subr.mxu0 0.0
    %307 = vmatpush1.msra.mxu0 0.0
    %308 = vmatprep.subr.mxu0 0.0
    %309 = vmatpush1.msra.mxu0 0.0
    %310 = vmatprep.mubr.f32.mxu0 0.0
    %311 = vmatmul.mubr.f32.gmra.mrb[0].mxu0 %v244
    %v312 = vpop.f32.mrb[0].mxu0
    %v313 = vadd.f32 0.0, %v312
    %v314 = vpop.f32.mrb[0].mxu0
    %315 = vdwg.mxu0
    %316 = vrot.lane.b32.xlu0 %v145, 64
    %v317 = vpop.permute.xlu0 %316
    %v319 = vmul.f32 %v313, %v317
    %v320 = vsel %vm41, %v319, 0.0
    %v321 = vrot.slane %v320, 4
    %v322 = vadd.f32 %v320, %v321
    %v323 = vrot.slane %v322, 2
    %v324 = vadd.f32 %v322, %v323
    %v325 = vrot.slane %v324, 1
    %v326 = vadd.f32 %v324, %v325
    %vm327 = vcmask 253952
    %328 = vst.msk [vmem:[#allocation2] sm:$0x1] %vm327, %v326
    %v329 = vlaneseq
    %v330 = vshrl.u32 %v329, 7
    %v331 = vsub.s32 1, %v330
    %v332 = vrot.slane %v123, %v331
    %vm334 = vcmask 1045504
    %v335 = vrot.slane %v123, 2
    %v336 = vrot.slane %v128, 2
    %v337 = vsel %vm334, %v335, %v336
    %338 = vrot.lane.b32.xlu0 %v337, 96
    %v339 = vpop.permute.xlu0 %338
    %v341 = vmul.f32 %v332, %v339
    %v343 = vsel %vm41, %v341, 0
    %345 = vmatprep.subr.mxu0 0.0
    %346 = vmatpush1.msra.mxu0 %v131
    %347 = vmatprep.subr.mxu0 0.0
    %348 = vmatpush1.msra.mxu0 %v132
    %349 = vmatprep.subr.mxu0 0.0
    %350 = vmatpush1.msra.mxu0 %v133
    %351 = vmatprep.subr.mxu0 0.0
    %352 = vmatpush1.msra.mxu0 %v134
    %353 = vmatprep.subr.mxu0 0.0
    %354 = vmatpush1.msra.mxu0 0.0
    %355 = vmatprep.subr.mxu0 0.0
    %356 = vmatpush1.msra.mxu0 0.0
    %357 = vmatprep.subr.mxu0 0.0
    %358 = vmatpush1.msra.mxu0 0.0
    %359 = vmatprep.subr.mxu0 0.0
    %360 = vmatpush1.msra.mxu0 0.0
    %361 = vmatprep.subr.mxu0 0.0
    %362 = vmatpush1.msra.mxu0 0.0
    %363 = vmatprep.subr.mxu0 0.0
    %364 = vmatpush1.msra.mxu0 0.0
    %365 = vmatprep.subr.mxu0 0.0
    %366 = vmatpush1.msra.mxu0 0.0
    %367 = vmatprep.subr.mxu0 0.0
    %368 = vmatpush1.msra.mxu0 0.0
    %369 = vmatprep.subr.mxu0 0.0
    %370 = vmatpush1.msra.mxu0 0.0
    %371 = vmatprep.subr.mxu0 0.0
    %372 = vmatpush1.msra.mxu0 0.0
    %373 = vmatprep.subr.mxu0 0.0
    %374 = vmatpush1.msra.mxu0 0.0
    %375 = vmatprep.subr.mxu0 0.0
    %376 = vmatpush1.msra.mxu0 0.0
    %377 = vmatprep.subr.mxu0 0.0
    %378 = vmatpush1.msra.mxu0 0.0
    %379 = vmatprep.subr.mxu0 0.0
    %380 = vmatpush1.msra.mxu0 0.0
    %381 = vmatprep.subr.mxu0 0.0
    %382 = vmatpush1.msra.mxu0 0.0
    %383 = vmatprep.subr.mxu0 0.0
    %384 = vmatpush1.msra.mxu0 0.0
    %385 = vmatprep.subr.mxu0 0.0
    %386 = vmatpush1.msra.mxu0 0.0
    %387 = vmatprep.subr.mxu0 0.0
    %388 = vmatpush1.msra.mxu0 0.0
    %389 = vmatprep.subr.mxu0 0.0
    %390 = vmatpush1.msra.mxu0 0.0
    %391 = vmatprep.subr.mxu0 0.0
    %392 = vmatpush1.msra.mxu0 0.0
    %393 = vmatprep.subr.mxu0 0.0
    %394 = vmatpush1.msra.mxu0 0.0
    %395 = vmatprep.subr.mxu0 0.0
    %396 = vmatpush1.msra.mxu0 0.0
    %397 = vmatprep.subr.mxu0 0.0
    %398 = vmatpush1.msra.mxu0 0.0
    %399 = vmatprep.subr.mxu0 0.0
    %400 = vmatpush1.msra.mxu0 0.0
    %401 = vmatprep.subr.mxu0 0.0
    %402 = vmatpush1.msra.mxu0 0.0
    %403 = vmatprep.subr.mxu0 0.0
    %404 = vmatpush1.msra.mxu0 0.0
    %405 = vmatprep.subr.mxu0 0.0
    %406 = vmatpush1.msra.mxu0 0.0
    %407 = vmatprep.subr.mxu0 0.0
    %408 = vmatpush1.msra.mxu0 0.0
    %409 = vmatprep.mubr.f32.mxu0 0.0
    %410 = vmatmul.mubr.f32.gmra.mrb[0].mxu0 %v343
    %v411 = vpop.f32.mrb[0].mxu0
    %v412 = vadd.f32 0.0, %v411
    %v413 = vpop.f32.mrb[0].mxu0
    %414 = vdwg.mxu0
    %v415 = vsel %vm223, %v412, -inf
    %v416 = vrot.slane %v415, 4
    %v417 = vmax.f32 %v415, %v416
    %v418 = vrot.slane %v417, 2
    %v419 = vmax.f32 %v417, %v418
    %v420 = vrot.slane %v419, 1
    %v421 = vmax.f32 %v419, %v420
    %v422 = vsub.f32 %v412, %v421
    %v423 = vmul.f32 %v422, 1.442695
    %v424 = vpow.pop %v423
    %v425 = vsel %vm223, %v424, 0.0
    %v426 = vrot.slane %v425, 4
    %v427 = vadd.f32 %v425, %v426
    %v428 = vrot.slane %v427, 2
    %v429 = vadd.f32 %v427, %v428
    %v430 = vrot.slane %v429, 1
    %v431 = vadd.f32 %v429, %v430
    %v432 = vrcp.pop %v431
    %v433 = vmul.f32 %v424, %v432
    %v435 = vsel %vm223, %v433, 0
    %437 = vmatprep.subr.mxu0 0.0
    %438 = vmatpush1.msra.mxu0 %v135
    %439 = vmatprep.subr.mxu0 0.0
    %440 = vmatpush1.msra.mxu0 0.0
    %441 = vmatprep.subr.mxu0 0.0
    %442 = vmatpush1.msra.mxu0 0.0
    %443 = vmatprep.subr.mxu0 0.0
    %444 = vmatpush1.msra.mxu0 0.0
    %445 = vmatprep.subr.mxu0 0.0
    %446 = vmatpush1.msra.mxu0 0.0
    %447 = vmatprep.subr.mxu0 0.0
    %448 = vmatpush1.msra.mxu0 0.0
    %449 = vmatprep.subr.mxu0 0.0
    %450 = vmatpush1.msra.mxu0 0.0
    %451 = vmatprep.subr.mxu0 0.0
    %452 = vmatpush1.msra.mxu0 0.0
    %453 = vmatprep.subr.mxu0 0.0
    %454 = vmatpush1.msra.mxu0 0.0
    %455 = vmatprep.subr.mxu0 0.0
    %456 = vmatpush1.msra.mxu0 0.0
    %457 = vmatprep.subr.mxu0 0.0
    %458 = vmatpush1.msra.mxu0 0.0
    %459 = vmatprep.subr.mxu0 0.0
    %460 = vmatpush1.msra.mxu0 0.0
    %461 = vmatprep.subr.mxu0 0.0
    %462 = vmatpush1.msra.mxu0 0.0
    %463 = vmatprep.subr.mxu0 0.0
    %464 = vmatpush1.msra.mxu0 0.0
    %465 = vmatprep.subr.mxu0 0.0
    %466 = vmatpush1.msra.mxu0 0.0
    %467 = vmatprep.subr.mxu0 0.0
    %468 = vmatpush1.msra.mxu0 0.0
    %469 = vmatprep.subr.mxu0 0.0
    %470 = vmatpush1.msra.mxu0 0.0
    %471 = vmatprep.subr.mxu0 0.0
    %472 = vmatpush1.msra.mxu0 0.0
    %473 = vmatprep.subr.mxu0 0.0
    %474 = vmatpush1.msra.mxu0 0.0
    %475 = vmatprep.subr.mxu0 0.0
    %476 = vmatpush1.msra.mxu0 0.0
    %477 = vmatprep.subr.mxu0 0.0
    %478 = vmatpush1.msra.mxu0 0.0
    %479 = vmatprep.subr.mxu0 0.0
    %480 = vmatpush1.msra.mxu0 0.0
    %481 = vmatprep.subr.mxu0 0.0
    %482 = vmatpush1.msra.mxu0 0.0
    %483 = vmatprep.subr.mxu0 0.0
    %484 = vmatpush1.msra.mxu0 0.0
    %485 = vmatprep.subr.mxu0 0.0
    %486 = vmatpush1.msra.mxu0 0.0
    %487 = vmatprep.subr.mxu0 0.0
    %488 = vmatpush1.msra.mxu0 0.0
    %489 = vmatprep.subr.mxu0 0.0
    %490 = vmatpush1.msra.mxu0 0.0
    %491 = vmatprep.subr.mxu0 0.0
    %492 = vmatpush1.msra.mxu0 0.0
    %493 = vmatprep.subr.mxu0 0.0
    %494 = vmatpush1.msra.mxu0 0.0
    %495 = vmatprep.subr.mxu0 0.0
    %496 = vmatpush1.msra.mxu0 0.0
    %497 = vmatprep.subr.mxu0 0.0
    %498 = vmatpush1.msra.mxu0 0.0
    %499 = vmatprep.subr.mxu0 0.0
    %500 = vmatpush1.msra.mxu0 0.0
    %501 = vmatprep.mubr.f32.mxu0 0.0
    %502 = vmatmul.mubr.f32.gmra.mrb[0].mxu0 %v435
    %v503 = vpop.f32.mrb[0].mxu0
    %v504 = vadd.f32 0.0, %v503
    %v505 = vpop.f32.mrb[0].mxu0
    %506 = vdwg.mxu0
    %507 = vrot.lane.b32.xlu0 %v337, 64
    %v508 = vpop.permute.xlu0 %507
    %v510 = vmul.f32 %v504, %v508
    %v511 = vsel %vm41, %v510, 0.0
    %v512 = vrot.slane %v511, 4
    %v513 = vadd.f32 %v511, %v512
    %v514 = vrot.slane %v513, 2
    %v515 = vadd.f32 %v513, %v514
    %v516 = vrot.slane %v515, 1
    %v517 = vadd.f32 %v515, %v516
    %518 = vst.msk [vmem:[#allocation2 + $0x1] sm:$0x1] %vm327, %v517
    %v519 = vld [vmem:[#allocation2] sm:$0x3]
    %v520 = vld [vmem:[%s5] sm:$0xff]
    %v521 = vld [vmem:[%s5 + $0x8] sm:$0xff]
    %v522 = vld [vmem:[%s5 + $0x10] sm:$0xff]
    %v523 = vld [vmem:[%s5 + $0x18] sm:$0xff]
    %v524 = vld [vmem:[%s6] sm:$0x1]
    %v526 = vlaneseq
    %v527 = vshrl.u32 %v526, 7
    %v528 = vsub.s32 0, %v527
    %v529 = vrot.slane %v524, %v528
    %v532 = vsel %vm41, %v519, 0
    %534 = vmatprep.subr.mxu0 0.0
    %535 = vmatpush1.msra.mxu0 %v520
    %536 = vmatprep.subr.mxu0 0.0
    %537 = vmatpush1.msra.mxu0 %v521
    %538 = vmatprep.subr.mxu0 0.0
    %539 = vmatpush1.msra.mxu0 %v522
    %540 = vmatprep.subr.mxu0 0.0
    %541 = vmatpush1.msra.mxu0 %v523
    %542 = vmatprep.subr.mxu0 0.0
    %543 = vmatpush1.msra.mxu0 0.0
    %544 = vmatprep.subr.mxu0 0.0
    %545 = vmatpush1.msra.mxu0 0.0
    %546 = vmatprep.subr.mxu0 0.0
    %547 = vmatpush1.msra.mxu0 0.0
    %548 = vmatprep.subr.mxu0 0.0
    %549 = vmatpush1.msra.mxu0 0.0
    %550 = vmatprep.subr.mxu0 0.0
    %551 = vmatpush1.msra.mxu0 0.0
    %552 = vmatprep.subr.mxu0 0.0
    %553 = vmatpush1.msra.mxu0 0.0
    %554 = vmatprep.subr.mxu0 0.0
    %555 = vmatpush1.msra.mxu0 0.0
    %556 = vmatprep.subr.mxu0 0.0
    %557 = vmatpush1.msra.mxu0 0.0
    %558 = vmatprep.subr.mxu0 0.0
    %559 = vmatpush1.msra.mxu0 0.0
    %560 = vmatprep.subr.mxu0 0.0
    %561 = vmatpush1.msra.mxu0 0.0
    %562 = vmatprep.subr.mxu0 0.0
    %563 = vmatpush1.msra.mxu0 0.0
    %564 = vmatprep.subr.mxu0 0.0
    %565 = vmatpush1.msra.mxu0 0.0
    %566 = vmatprep.subr.mxu0 0.0
    %567 = vmatpush1.msra.mxu0 0.0
    %568 = vmatprep.subr.mxu0 0.0
    %569 = vmatpush1.msra.mxu0 0.0
    %570 = vmatprep.subr.mxu0 0.0
    %571 = vmatpush1.msra.mxu0 0.0
    %572 = vmatprep.subr.mxu0 0.0
    %573 = vmatpush1.msra.mxu0 0.0
    %574 = vmatprep.subr.mxu0 0.0
    %575 = vmatpush1.msra.mxu0 0.0
    %576 = vmatprep.subr.mxu0 0.0
    %577 = vmatpush1.msra.mxu0 0.0
    %578 = vmatprep.subr.mxu0 0.0
    %579 = vmatpush1.msra.mxu0 0.0
    %580 = vmatprep.subr.mxu0 0.0
    %581 = vmatpush1.msra.mxu0 0.0
    %582 = vmatprep.subr.mxu0 0.0
    %583 = vmatpush1.msra.mxu0 0.0
    %584 = vmatprep.subr.mxu0 0.0
    %585 = vmatpush1.msra.mxu0 0.0
    %586 = vmatprep.subr.mxu0 0.0
    %587 = vmatpush1.msra.mxu0 0.0
    %588 = vmatprep.subr.mxu0 0.0
    %589 = vmatpush1.msra.mxu0 0.0
    %590 = vmatprep.subr.mxu0 0.0
    %591 = vmatpush1.msra.mxu0 0.0
    %592 = vmatprep.subr.mxu0 0.0
    %593 = vmatpush1.msra.mxu0 0.0
    %594 = vmatprep.subr.mxu0 0.0
    %595 = vmatpush1.msra.mxu0 0.0
    %596 = vmatprep.subr.mxu0 0.0
    %597 = vmatpush1.msra.mxu0 0.0
    %598 = vmatprep.mubr.f32.mxu0 0.0
    %599 = vmatmul.mubr.f32.gmra.mrb[0].mxu0 %v532
    %v600 = vpop.f32.mrb[0].mxu0
    %v601 = vadd.f32 %v529, %v600
    %v602 = vpop.f32.mrb[0].mxu0
    %603 = vdwg.mxu0
    %vm604 = vcmask 254976
    %605 = vst.msk [vmem:[#allocation3] sm:$0x3] %vm604, %v601
    // Predicated region
    $region30: #{cross_attention_image_based.1} parent=1 // pred_check
      _
    $region31: #{cross_attention_image_based.1} parent=1 // pred_check_branch
      %607 = sbr.rel (0) target = $region33
    $region32: #{cross_attention_image_based.1} parent=1 // pred_region
      %s609 = ssub.s32 32, 32
      %610 = vsyncadd [#allocation4], %s609
      %s612 = sshll.u32 [#allocation3], 4
      %s613 = int_to_ptr.vmem [resolvable:$true] %s612
      %615 = dma.vmem_to_hbm [thread:$0]  %s613, 32, %s7, [#allocation4]
    $region33: #{cross_attention_image_based.1} parent=1 // pred_fallthru
      _
    // Predicated region
    $region34: #{cross_attention_image_based.1} parent=1 // pred_check
      _
    $region35: #{cross_attention_image_based.1} parent=1 // pred_check_branch
      %617 = sbr.rel (0) target = $region37
    $region36: #{cross_attention_image_based.1} parent=1 // pred_region
      %618 = dma.done [#allocation4], 32
    $region37: #{cross_attention_image_based.1} parent=1 // pred_fallthru
      _
    %619 = vsyncpa [#allocation4], 1

</llo_original>
